<compile_context>
chip_gen: v7x
topology: tpu7x:2x2x1
jax: 0.10.0
libtpu: 0.0.40
codegen_flags: <defaults>
</compile_context>

<pallas_src>
import functools

import jax
import jax.numpy as jnp
from jax.experimental import pallas as pl
from jax.experimental.pallas import tpu as pltpu


def _round_up(x, m):
    return (x + m - 1) // m * m


def _gelu(x):
    # tanh-approximate GELU (EUP-friendly on TPU)
    return jax.nn.gelu(x, approximate=True)


# -----------------------------------------------------------------------------
# Kernel: one grid step = one (batch, row-tile) block of the [B, L+1, D] output.
#
#   phase_sm  : [B]         f32, SMEM (whole array, read only in the last tile)
#   wl_ref    : [1, tl, 1]  f32  wavelength rows of this tile
#   fx_ref    : [1, tl, 1]  f32  flux rows of this tile
#   consts_ref: [8, D]      f32  rows: 0 freqs, 1 offs, 2 flux_w, 3 flux_b,
#                                      4 wl_b1, 5 wl_b2, 6 ph_b1, 7 ph_b2
#   w_ref     : [4D, D]     matmul_dtype rows: 0:D wl_w1, D:2D wl_w2,
#                                              2D:3D ph_w1, 3D:4D ph_w2
#   out_ref   : [1, tl, D]  f32
# -----------------------------------------------------------------------------
def _spectra_kernel(phase_sm, wl_ref, fx_ref, consts_ref, w_ref, out_ref, *,
                    L, tl, matmul_dtype):
    D = out_ref.shape[-1]
    b = pl.program_id(0)
    j = pl.program_id(1)

    freqs = consts_ref[0:1, :]          # [1, D]
    offs = consts_ref[1:2, :]           # [1, D]  (0 -> sin half, pi/2 -> cos half)

    # ---- flux-linear + wavelength sinusoidal-MLP rows -----------------------
    # Skipped only for a block that holds nothing but the phase / padding rows
    # (happens when L % tl == 0).
    @pl.when(j * tl < L)
    def _():
        flux_w = consts_ref[2:3, :]
        flux_b = consts_ref[3:4, :]
        b1 = consts_ref[4:5, :]
        b2 = consts_ref[5:6, :]
        w1 = w_ref[0:D, :]
        w2 = w_ref[D:2 * D, :]

        wl = wl_ref[0]                  # [tl, 1]
        fx = fx_ref[0]                  # [tl, 1]

        # sinusoidal features: sin(x * f + off)  (sin(a + pi/2) == cos(a))
        sin_feat = jnp.sin(wl * freqs + offs)                       # [tl, D]
        h = _gelu(
            jnp.dot(sin_feat.astype(matmul_dtype), w1,
                    preferred_element_type=jnp.float32) + b1
        )
        wl_e = (
            jnp.dot(h.astype(matmul_dtype), w2,
                    preferred_element_type=jnp.float32) + b2
        )                                                            # [tl, D]
        # flux Linear(1, D): x * w + b, added to the wavelength embedding
        out_ref[0] = fx * flux_w + flux_b + wl_e

    # ---- phase sinusoidal-MLP row (output row L), folded into its row tile ---
    @pl.when(j == L // tl)
    def _():
        b1 = consts_ref[6:7, :]
        b2 = consts_ref[7:8, :]
        w1 = w_ref[2 * D:3 * D, :]
        w2 = w_ref[3 * D:4 * D, :]

        ph = phase_sm[b]                # scalar f32 from SMEM
        feat = jnp.sin(ph * freqs + offs)                            # [1, D]
        h = _gelu(
            jnp.dot(feat.astype(matmul_dtype), w1,
                    preferred_element_type=jnp.float32) + b1
        )
        pe = (
            jnp.dot(h.astype(matmul_dtype), w2,
                    preferred_element_type=jnp.float32) + b2
        )                                                            # [1, D]
        # This store comes after the block store above, so it overwrites the
        # (garbage) value the flux/wavelength branch put at local row L % tl.
        out_ref[0, pl.ds(L % tl, 1), :] = pe


# -----------------------------------------------------------------------------
# Wrapper
# -----------------------------------------------------------------------------
def _choose_tile_rows(L, D, tile_rows):
    # Per-step VMEM (double-buffered): output 2*tl*D*4 B; the two (tl, 1) input
    # blocks lane-pad to (8,128) tiles -> 2 * 2 * tl * 512 B.  Keep the total
    # around <= 8 MiB so it fits every generation's scoped-VMEM default
    # (v5e 16 MiB, v6e/v7x 32 MiB; v7x has only 64 MiB physical) and so the
    # grid keeps several steps for v7x megacore sharding.
    budget = 8 * 1024 * 1024
    per_row = 8 * D + 2048
    tl = min(int(tile_rows), max(8, budget // per_row))
    tl = max(8, (tl // 8) * 8)
    tl = min(tl, _round_up(L + 1, 8))   # never pad the row axis past one tile
    return tl


def spectra_embedding(wavelength, flux, phase, params, *,
                      tile_rows=2048, matmul_dtype=jnp.float32):
    """Forward pass of spectraEmbedding (concat=False).

    wavelength, flux: [B, L]; phase: [B].  Returns [B, L+1, D] float32.
    matmul_dtype=jnp.bfloat16 is recommended on v6e/v7x (f32 accumulation is
    kept); default f32 preserves strict parity with the reference.
    """
    B, L = wavelength.shape
    consts = params["consts"]                               # [8, D] f32
    D = int(consts.shape[1])
    # Pre-cast the matmul weights once here (not per grid step in the kernel).
    weights = params["weights"].astype(matmul_dtype)        # [4D, D]

    tl = _choose_tile_rows(L, D, tile_rows)
    nj = pl.cdiv(L + 1, tl)             # row tiles per batch (incl. phase row)
    in_j_max = max((L - 1) // tl, 0)    # clamp for the phase-only edge block

    # Free, metadata-only reshapes (no extra HBM pass, unlike stack/pad).
    wl3 = wavelength.astype(jnp.float32).reshape(B, L, 1)
    fx3 = flux.astype(jnp.float32).reshape(B, L, 1)
    ph = phase.astype(jnp.float32).reshape(B)

    kernel = functools.partial(_spectra_kernel, L=L, tl=tl,
                               matmul_dtype=matmul_dtype)

    cost = pl.CostEstimate(
        flops=int(B * (L + 1) * 4 * D * D),
        transcendentals=int(B * (L + 1) * 2 * D),           # sin + tanh-gelu
        bytes_accessed=int(4 * (2 * B * L + B + 8 * D + 4 * D * D
                                + B * (L + 1) * D)),
    )

    in_idx = lambda b, j: (b, jnp.minimum(j, in_j_max), 0)

    out = pl.pallas_call(
        kernel,
        out_shape=jax.ShapeDtypeStruct((B, L + 1, D), jnp.float32),
        grid=(B, nj),
        in_specs=[
            pl.BlockSpec(memory_space=pltpu.MemorySpace.SMEM),   # phase [B]
            pl.BlockSpec((1, tl, 1), in_idx),                    # wavelength
            pl.BlockSpec((1, tl, 1), in_idx),                    # flux
            pl.BlockSpec((8, D), lambda b, j: (0, 0)),           # packed consts
            pl.BlockSpec((4 * D, D), lambda b, j: (0, 0)),       # packed weights
        ],
        out_specs=pl.BlockSpec((1, tl, D), lambda b, j: (b, j, 0)),
        compiler_params=pltpu.CompilerParams(
            dimension_semantics=("parallel", "parallel"),
        ),
        cost_estimate=cost,
    )(ph, wl3, fx3, consts, weights)
    return out


# -----------------------------------------------------------------------------
# Parameters
# -----------------------------------------------------------------------------
def init_params(key, model_dim=32):
    D = model_dim
    half = D // 2
    ks = jax.random.split(key, 10)

    # sinusoidal constants: emb = sin(x * freqs + offs)
    base = jnp.exp(-jnp.log(10000.0) * jnp.arange(half, dtype=jnp.float32) / half)
    freqs = jnp.concatenate([base, base])                                   # [D]
    offs = jnp.concatenate(
        [jnp.zeros((half,), jnp.float32), jnp.full((half,), jnp.pi / 2, jnp.float32)]
    )                                                                       # [D]

    def vec(k):
        return 0.1 * jax.random.normal(k, (D,), jnp.float32)

    def mat(k):
        return 0.1 * jax.random.normal(k, (D, D), jnp.float32)

    flux_w = 0.1 * jax.random.normal(ks[0], (D,), jnp.float32)  # Linear(1, D) weight
    flux_b = vec(ks[1])
    wl_w1, wl_b1 = mat(ks[2]), vec(ks[3])
    wl_w2, wl_b2 = mat(ks[4]), vec(ks[5])
    ph_w1, ph_b1 = mat(ks[6]), vec(ks[7])
    ph_w2, ph_b2 = mat(ks[8]), vec(ks[9])

    consts = jnp.stack(
        [freqs, offs, flux_w, flux_b, wl_b1, wl_b2, ph_b1, ph_b2], axis=0
    )                                                                       # [8, D]
    weights = jnp.concatenate([wl_w1, wl_w2, ph_w1, ph_w2], axis=0)         # [4D, D]
    return dict(consts=consts, weights=weights)


# -----------------------------------------------------------------------------
# Pure-JAX reference (same forward pass) for verification
# -----------------------------------------------------------------------------
def spectra_embedding_ref(wavelength, flux, phase, params):
    c = params["consts"]
    D = c.shape[1]
    freqs, offs = c[0][None, :], c[1][None, :]
    flux_w, flux_b = c[2][None, :], c[3][None, :]
    wl_b1, wl_b2 = c[4][None, :], c[5][None, :]
    ph_b1, ph_b2 = c[6][None, :], c[7][None, :]
    w = params["weights"].astype(jnp.float32)
    wl_w1, wl_w2 = w[:D], w[D:2 * D]
    ph_w1, ph_w2 = w[2 * D:3 * D], w[3 * D:4 * D]

    def sin_mlp(x, w1, b1, w2, b2):
        emb = jnp.sin(x * freqs + offs)
        h = jax.nn.gelu(emb @ w1 + b1, approximate=True)
        return h @ w2 + b2

    wl_e = sin_mlp(wavelength[..., None], wl_w1, wl_b1, wl_w2, wl_b2)   # [B, L, D]
    fl_e = flux[..., None] * flux_w + flux_b                            # [B, L, D]
    ph_e = sin_mlp(phase[:, None, None], ph_w1, ph_b1, ph_w2, ph_b2)    # [B, 1, D]
    return jnp.concatenate([fl_e + wl_e, ph_e], axis=1)


if __name__ == "__main__":
    B, L, D = 2, 8, 32
    key = jax.random.PRNGKey(0)
    k_wl, k_fl, k_ph, k_par = jax.random.split(key, 4)

    wavelength = jax.random.uniform(k_wl, (B, L), jnp.float32, 3.0, 9.0)
    flux = jax.random.normal(k_fl, (B, L), jnp.float32)
    phase = jax.random.uniform(k_ph, (B,), jnp.float32, -10.0, 30.0)

    params = init_params(k_par, model_dim=D)

    out = spectra_embedding(wavelength, flux, phase, params)
    out = jax.block_until_ready(out)
    ref = spectra_embedding_ref(wavelength, flux, phase, params)
    assert out.shape == (B, L + 1, D), out.shape
    err = float(jnp.max(jnp.abs(out - ref)))
    assert jnp.allclose(out, ref, atol=1e-4, rtol=1e-4), err

    # Second config: multi-tile grid including a phase-only edge block
    # (L2 % tile == 0 exercises the clamped input index map and masked edge).
    B2, L2 = 3, 16
    k1, k2, k3 = jax.random.split(jax.random.PRNGKey(1), 3)
    wl2 = jax.random.uniform(k1, (B2, L2), jnp.float32, 3.0, 9.0)
    fx2 = jax.random.normal(k2, (B2, L2), jnp.float32)
    ph2 = jax.random.uniform(k3, (B2,), jnp.float32, -10.0, 30.0)
    out2 = jax.block_until_ready(
        spectra_embedding(wl2, fx2, ph2, params, tile_rows=8))
    ref2 = spectra_embedding_ref(wl2, fx2, ph2, params)
    err2 = float(jnp.max(jnp.abs(out2 - ref2)))
    assert jnp.allclose(out2, ref2, atol=1e-4, rtol=1e-4), err2

    print("KERNEL_OK")
</pallas_src>

<mosaic_0001>
module attributes {stable_mosaic.version = 11 : i64} {
  func.func @_spectra_kernel(%arg0: i32, %arg1: i32, %arg2: memref<2xf32, #tpu.memory_space<smem>>, %arg3: memref<1x16x1xf32, #tpu.memory_space<vmem>>, %arg4: memref<1x16x1xf32, #tpu.memory_space<vmem>>, %arg5: memref<8x32xf32, #tpu.memory_space<vmem>>, %arg6: memref<128x32xf32, #tpu.memory_space<vmem>>, %arg7: memref<1x16x32xf32, #tpu.memory_space<vmem>>) attributes {dimension_semantics = [#tpu.dimension_semantics<parallel>, #tpu.dimension_semantics<parallel>], iteration_bounds = array<i64: 2, 1>, scalar_prefetch = 0 : i64, scratch_operands = 0 : i64, tpu.core_type = #tpu.core_type<tc>, window_params = [{transform_indices = @transform_0, window_bounds = array<i64: 2>}, {transform_indices = @transform_1, window_bounds = array<i64: 1, 16, 1>}, {transform_indices = @transform_2, window_bounds = array<i64: 1, 16, 1>}, {pipeline_mode = #tpu.pipeline_mode<synchronous>, transform_indices = @transform_3, window_bounds = array<i64: 8, 32>}, {pipeline_mode = #tpu.pipeline_mode<synchronous>, transform_indices = @transform_4, window_bounds = array<i64: 128, 32>}, {transform_indices = @transform_5, window_bounds = array<i64: 1, 16, 32>}]} {
    %c0 = arith.constant 0 : index
    %c0_0 = arith.constant 0 : index
    %0 = vector.load %arg5[%c0, %c0_0] : memref<8x32xf32, #tpu.memory_space<vmem>>, vector<1x32xf32>
    %c1 = arith.constant 1 : index
    %c0_1 = arith.constant 0 : index
    %1 = vector.load %arg5[%c1, %c0_1] : memref<8x32xf32, #tpu.memory_space<vmem>>, vector<1x32xf32>
    %c16_i32 = arith.constant 16 : i32
    %2 = arith.muli %arg1, %c16_i32 : i32
    %c8_i32 = arith.constant 8 : i32
    %3 = arith.cmpi slt, %2, %c8_i32 : i32
    %4 = arith.extui %3 : i1 to i32
    %c0_i32 = arith.constant 0 : i32
    %5 = arith.cmpi ne, %4, %c0_i32 : i32
    scf.if %5 {
      %c2 = arith.constant 2 : index
      %c0_4 = arith.constant 0 : index
      %9 = vector.load %arg5[%c2, %c0_4] : memref<8x32xf32, #tpu.memory_space<vmem>>, vector<1x32xf32>
      %c3 = arith.constant 3 : index
      %c0_5 = arith.constant 0 : index
      %10 = vector.load %arg5[%c3, %c0_5] : memref<8x32xf32, #tpu.memory_space<vmem>>, vector<1x32xf32>
      %c4 = arith.constant 4 : index
      %c0_6 = arith.constant 0 : index
      %11 = vector.load %arg5[%c4, %c0_6] : memref<8x32xf32, #tpu.memory_space<vmem>>, vector<1x32xf32>
      %c5 = arith.constant 5 : index
      %c0_7 = arith.constant 0 : index
      %12 = vector.load %arg5[%c5, %c0_7] : memref<8x32xf32, #tpu.memory_space<vmem>>, vector<1x32xf32>
      %c0_8 = arith.constant 0 : index
      %c0_9 = arith.constant 0 : index
      %13 = vector.load %arg6[%c0_8, %c0_9] : memref<128x32xf32, #tpu.memory_space<vmem>>, vector<32x32xf32>
      %c32 = arith.constant 32 : index
      %c0_10 = arith.constant 0 : index
      %14 = vector.load %arg6[%c32, %c0_10] : memref<128x32xf32, #tpu.memory_space<vmem>>, vector<32x32xf32>
      %c0_11 = arith.constant 0 : index
      %c0_12 = arith.constant 0 : index
      %c0_13 = arith.constant 0 : index
      %15 = vector.load %arg3[%c0_11, %c0_12, %c0_13] : memref<1x16x1xf32, #tpu.memory_space<vmem>>, vector<1x16x1xf32>
      %16 = vector.shape_cast %15 : vector<1x16x1xf32> to vector<16x1xf32>
      %c0_14 = arith.constant 0 : index
      %c0_15 = arith.constant 0 : index
      %c0_16 = arith.constant 0 : index
      %17 = vector.load %arg4[%c0_14, %c0_15, %c0_16] : memref<1x16x1xf32, #tpu.memory_space<vmem>>, vector<1x16x1xf32>
      %18 = vector.shape_cast %17 : vector<1x16x1xf32> to vector<16x1xf32>
      %19 = vector.broadcast %16 : vector<16x1xf32> to vector<16x32xf32>
      %20 = vector.broadcast %0 : vector<1x32xf32> to vector<16x32xf32>
      %21 = arith.mulf %19, %20 : vector<16x32xf32>
      %22 = vector.broadcast %1 : vector<1x32xf32> to vector<16x32xf32>
      %23 = arith.addf %21, %22 : vector<16x32xf32>
      %24 = math.sin %23 : vector<16x32xf32>
      %cst = arith.constant dense<0.000000e+00> : vector<16x32xf32>
      %25 = tpu.matmul %24, %13, %cst {dimension_numbers = #tpu.dot_dimension_numbers<[1], [0], [0], [1], [0, 0, 1, 1], [], []>} : vector<16x32xf32>, vector<32x32xf32>, vector<16x32xf32> -> vector<16x32xf32>
      %26 = vector.broadcast %11 : vector<1x32xf32> to vector<16x32xf32>
      %27 = arith.addf %25, %26 : vector<16x32xf32>
      %28 = arith.mulf %27, %27 : vector<16x32xf32>
      %29 = arith.mulf %27, %28 : vector<16x32xf32>
      %cst_17 = arith.constant 4.471500e-02 : f32
      %30 = vector.broadcast %cst_17 : f32 to vector<16x32xf32>
      %31 = arith.mulf %30, %29 : vector<16x32xf32>
      %32 = arith.addf %27, %31 : vector<16x32xf32>
      %cst_18 = arith.constant 0.797884583 : f32
      %33 = vector.broadcast %cst_18 : f32 to vector<16x32xf32>
      %34 = arith.mulf %33, %32 : vector<16x32xf32>
      %35 = math.tanh %34 : vector<16x32xf32>
      %cst_19 = arith.constant 1.000000e+00 : f32
      %36 = vector.broadcast %cst_19 : f32 to vector<16x32xf32>
      %37 = arith.addf %36, %35 : vector<16x32xf32>
      %cst_20 = arith.constant 5.000000e-01 : f32
      %38 = vector.broadcast %cst_20 : f32 to vector<16x32xf32>
      %39 = arith.mulf %38, %37 : vector<16x32xf32>
      %40 = arith.mulf %27, %39 : vector<16x32xf32>
      %cst_21 = arith.constant dense<0.000000e+00> : vector<16x32xf32>
      %41 = tpu.matmul %40, %14, %cst_21 {dimension_numbers = #tpu.dot_dimension_numbers<[1], [0], [0], [1], [0, 0, 1, 1], [], []>} : vector<16x32xf32>, vector<32x32xf32>, vector<16x32xf32> -> vector<16x32xf32>
      %42 = vector.broadcast %12 : vector<1x32xf32> to vector<16x32xf32>
      %43 = arith.addf %41, %42 : vector<16x32xf32>
      %44 = vector.broadcast %18 : vector<16x1xf32> to vector<16x32xf32>
      %45 = vector.broadcast %9 : vector<1x32xf32> to vector<16x32xf32>
      %46 = arith.mulf %44, %45 : vector<16x32xf32>
      %47 = vector.broadcast %10 : vector<1x32xf32> to vector<16x32xf32>
      %48 = arith.addf %46, %47 : vector<16x32xf32>
      %49 = arith.addf %48, %43 : vector<16x32xf32>
      %c0_22 = arith.constant 0 : index
      %c0_23 = arith.constant 0 : index
      %c0_24 = arith.constant 0 : index
      %50 = vector.load %arg7[%c0_22, %c0_23, %c0_24] : memref<1x16x32xf32, #tpu.memory_space<vmem>>, vector<1x16x32xf32>
      %51 = vector.shape_cast %50 : vector<1x16x32xf32> to vector<16x32xf32>
      %52 = vector.shape_cast %49 : vector<16x32xf32> to vector<1x16x32xf32>
      tpu.vector_store %arg7[%c0_22, %c0_23, %c0_24], %52 {strides = array<i32>} : memref<1x16x32xf32, #tpu.memory_space<vmem>>, vector<1x16x32xf32>,
    } else {
    }
    %c0_i32_2 = arith.constant 0 : i32
    %6 = arith.cmpi eq, %arg1, %c0_i32_2 : i32
    %7 = arith.extui %6 : i1 to i32
    %c0_i32_3 = arith.constant 0 : i32
    %8 = arith.cmpi ne, %7, %c0_i32_3 : i32
    scf.if %8 {
      %c6 = arith.constant 6 : index
      %c0_4 = arith.constant 0 : index
      %9 = vector.load %arg5[%c6, %c0_4] : memref<8x32xf32, #tpu.memory_space<vmem>>, vector<1x32xf32>
      %c7 = arith.constant 7 : index
      %c0_5 = arith.constant 0 : index
      %10 = vector.load %arg5[%c7, %c0_5] : memref<8x32xf32, #tpu.memory_space<vmem>>, vector<1x32xf32>
      %c64 = arith.constant 64 : index
      %c0_6 = arith.constant 0 : index
      %11 = vector.load %arg6[%c64, %c0_6] : memref<128x32xf32, #tpu.memory_space<vmem>>, vector<32x32xf32>
      %c96 = arith.constant 96 : index
      %c0_7 = arith.constant 0 : index
      %12 = vector.load %arg6[%c96, %c0_7] : memref<128x32xf32, #tpu.memory_space<vmem>>, vector<32x32xf32>
      %13 = arith.index_cast %arg0 : i32 to index
      %14 = memref.load %arg2[%13] : memref<2xf32, #tpu.memory_space<smem>>
      %15 = vector.broadcast %14 : f32 to vector<1x32xf32>
      %16 = arith.mulf %15, %0 : vector<1x32xf32>
      %17 = arith.addf %16, %1 : vector<1x32xf32>
      %18 = math.sin %17 : vector<1x32xf32>
      %cst = arith.constant dense<0.000000e+00> : vector<1x32xf32>
      %19 = tpu.matmul %18, %11, %cst {dimension_numbers = #tpu.dot_dimension_numbers<[1], [0], [0], [1], [0, 0, 1, 1], [], []>} : vector<1x32xf32>, vector<32x32xf32>, vector<1x32xf32> -> vector<1x32xf32>
      %20 = arith.addf %19, %9 : vector<1x32xf32>
      %21 = arith.mulf %20, %20 : vector<1x32xf32>
      %22 = arith.mulf %20, %21 : vector<1x32xf32>
      %cst_8 = arith.constant 4.471500e-02 : f32
      %23 = vector.broadcast %cst_8 : f32 to vector<1x32xf32>
      %24 = arith.mulf %23, %22 : vector<1x32xf32>
      %25 = arith.addf %20, %24 : vector<1x32xf32>
      %cst_9 = arith.constant 0.797884583 : f32
      %26 = vector.broadcast %cst_9 : f32 to vector<1x32xf32>
      %27 = arith.mulf %26, %25 : vector<1x32xf32>
      %28 = math.tanh %27 : vector<1x32xf32>
      %cst_10 = arith.constant 1.000000e+00 : f32
      %29 = vector.broadcast %cst_10 : f32 to vector<1x32xf32>
      %30 = arith.addf %29, %28 : vector<1x32xf32>
      %cst_11 = arith.constant 5.000000e-01 : f32
      %31 = vector.broadcast %cst_11 : f32 to vector<1x32xf32>
      %32 = arith.mulf %31, %30 : vector<1x32xf32>
      %33 = arith.mulf %20, %32 : vector<1x32xf32>
      %cst_12 = arith.constant dense<0.000000e+00> : vector<1x32xf32>
      %34 = tpu.matmul %33, %12, %cst_12 {dimension_numbers = #tpu.dot_dimension_numbers<[1], [0], [0], [1], [0, 0, 1, 1], [], []>} : vector<1x32xf32>, vector<32x32xf32>, vector<1x32xf32> -> vector<1x32xf32>
      %35 = arith.addf %34, %10 : vector<1x32xf32>
      %c0_13 = arith.constant 0 : index
      %c8 = arith.constant 8 : index
      %c0_14 = arith.constant 0 : index
      %36 = vector.load %arg7[%c0_13, %c8, %c0_14] : memref<1x16x32xf32, #tpu.memory_space<vmem>>, vector<1x1x32xf32>
      %37 = vector.shape_cast %36 : vector<1x1x32xf32> to vector<1x32xf32>
      %38 = vector.shape_cast %35 : vector<1x32xf32> to vector<1x1x32xf32>
      tpu.vector_store %arg7[%c0_13, %c8, %c0_14], %38 {strides = array<i32>} : memref<1x16x32xf32, #tpu.memory_space<vmem>>, vector<1x1x32xf32>,
    } else {
    }
    return
  }
  func.func @transform_0(%arg0: i32, %arg1: i32) -> i32 {
    %c0_i32 = arith.constant 0 : i32
    %c0_i32_0 = arith.constant 0 : i32
    return %c0_i32 : i32
  }
  func.func @transform_1(%arg0: i32, %arg1: i32) -> (i32, i32, i32) {
    %c0_i32 = arith.constant 0 : i32
    %0 = arith.minsi %arg1, %c0_i32 : i32
    %c0_i32_0 = arith.constant 0 : i32
    %c0_i32_1 = arith.constant 0 : i32
    return %arg0, %0, %c0_i32_0 : i32, i32, i32
  }
  func.func @transform_2(%arg0: i32, %arg1: i32) -> (i32, i32, i32) {
    %c0_i32 = arith.constant 0 : i32
    %0 = arith.minsi %arg1, %c0_i32 : i32
    %c0_i32_0 = arith.constant 0 : i32
    %c0_i32_1 = arith.constant 0 : i32
    return %arg0, %0, %c0_i32_0 : i32, i32, i32
  }
  func.func @transform_3(%arg0: i32, %arg1: i32) -> (i32, i32) {
    %c0_i32 = arith.constant 0 : i32
    %c0_i32_0 = arith.constant 0 : i32
    %c0_i32_1 = arith.constant 0 : i32
    return %c0_i32, %c0_i32_0 : i32, i32
  }
  func.func @transform_4(%arg0: i32, %arg1: i32) -> (i32, i32) {
    %c0_i32 = arith.constant 0 : i32
    %c0_i32_0 = arith.constant 0 : i32
    %c0_i32_1 = arith.constant 0 : i32
    return %c0_i32, %c0_i32_0 : i32, i32
  }
  func.func @transform_5(%arg0: i32, %arg1: i32) -> (i32, i32, i32) {
    %c0_i32 = arith.constant 0 : i32
    %c0_i32_0 = arith.constant 0 : i32
    return %arg0, %arg1, %c0_i32 : i32, i32, i32
  }
}

</mosaic_0001>

<llo_original>
// kernel: tpu_custom_call.1
$region0: #{tpu_custom_call.1}
  #allocation0 [shape = 'u32[]', space=smem, size = 0x4, offset = 0x4, fixed_abs, tag = 'smem constant byte address 0x4 - core index']
  #allocation1 [shape = 'u32[144,128]{1,0:T(1,128)}', space=vmem, size = 0x12000, scoped, tag = 'internal scratch']
  %s0 = inlined_call_operand.vmem [shape: f32[2], index: 0, kind: input, shape index: {}]
  %s1 = inlined_call_operand.vmem [shape: f32[2,8,1], index: 1, kind: input, shape index: {}]
  %s2 = inlined_call_operand.vmem [shape: f32[2,8,1], index: 2, kind: input, shape index: {}]
  %s3 = inlined_call_operand.vmem [shape: f32[8,32], index: 3, kind: input, shape index: {}]
  %s4 = inlined_call_operand.vmem [shape: f32[128,32], index: 4, kind: input, shape index: {}]
  %s5 = inlined_call_operand.vmem [shape: f32[2,9,32], index: 5, kind: output, shape index: {}]
  %s6 = sld [smem:[#allocation0]]
  $region65: #{tpu_custom_call.1} parent=0
    _
  %s8 = ssub.s32 1, %s6
  %s9 = scalar_select 0, %s8, %s6
  $region1: #{tpu_custom_call.1} parent=0
    #allocation2 [shape = 'u8[512]{0}', space=smem, size = 0x200, scoped, tag = 'input window, operand 0, single buffered']
    #allocation3 [shape = 's32[2]{0}', space=sflag, size = 0x8, scoped, tag = 'scoped memory for tpu_custom_call.1']
    %10 = vsyncpa [#allocation3], 0
    loop: start=0, step=1, limit=4
    $region2: #{tpu_custom_call.1} parent=1 // loop_pre_header
      _
    $region3: #{tpu_custom_call.1} parent=1 // loop_header
      %s12 = sphi 0, %s16
      %p13 = scmp.ge.s32.totalorder %s12, 4
      %s19 = sphi 0, %s31
      %s20 = sphi 0, %s27
      %s21 = sphi 0, %s19
      %s22 = sphi 0, %s20
      %s23 = sphi 0, %s21
      %s24 = sphi 0, %s22
      %s32 = sphi 0, %s32
      %s34 = sphi 0, %s32
      %s35 = sphi 0, %s34
      %s49 = sphi 0, %s35
      %s61 = sphi 0, %s63
      %s64 = sphi 0, %s61
      %s65 = sphi 0, %s64
      %s81 = sphi 0, %s65
      %s93 = sphi 0, %s95
      %s96 = sphi 0, %s93
      %s97 = sphi 0, %s96
      %s113 = sphi 0, %s97
      %s117 = sphi 0, %s117
      %s119 = sphi 0, %s117
      %s120 = sphi 0, %s119
      %s134 = sphi 0, %s120
      %s138 = sphi 0, %s138
      %s140 = sphi 0, %s138
      %s141 = sphi 0, %s140
      %s155 = sphi 0, %s141
      %s163 = sphi 0, %s165
      %s166 = sphi 0, %s163
      %s167 = sphi 0, %s166
      %s183 = sphi 0, %s167
    $region4: #{tpu_custom_call.1} parent=1 // loop_header_branch
      %15 = sbr.rel (%p13) target = $region8
    $region5: #{tpu_custom_call.1} parent=1 // loop_body
      %s17 = ssub.s32 %s12, 1
      %s18 = ssub.s32 %s12, 2
      %s25 = sadd.s32 1, %s20
      %p26 = scmp.ge.s32.totalorder %s25, 1
      %s27 = scalar_select %p26, 0, %s25
      %s28 = sadd.s32 1, %s19
      %s29 = scalar_select %p26, %s28, %s19
      %p30 = scmp.ge.s32.totalorder %s29, 2
      %s31 = scalar_select %p30, 0, %s29
      %s33 = sadd.s32 %s32, 1
      %p36 = scmp.eq.s32.totalorder %s12, 1
      %p37 = scmp.ne.s32.totalorder %s32, %s34
      %p38 = scmp.eq.s32.totalorder %s12, 0
      %p39 = por %p37, %p38
      %p40 = scmp.ne.s32.totalorder %s32, %s34
      %p41 = scmp.eq.s32.totalorder %s17, 1
      %p42 = por %p40, %p41
      %p43 = scmp.ne.s32.totalorder %s34, %s35
      %p44 = scmp.eq.s32.totalorder %s17, 0
      %p45 = por %p43, %p44
      %p46 = scmp.ne.s32.totalorder %s34, %s35
      %p47 = scmp.eq.s32.totalorder %s18, 1
      %p48 = por %p46, %p47
      %p50 = scmp.ne.s32.totalorder %s35, %s49
      %p51 = scmp.eq.s32.totalorder %s18, 0
      %p52 = por %p50, %p51
      %p53 = scmp.lt.s32.totalorder %s20, 0
      %s54 = scalar_select %p53, %s20, 0
      %p55 = scmp.lt.s32.totalorder %s27, 0
      %s56 = scalar_select %p55, %s27, 0
      %s57 = ssub.s32 %s19, %s31
      %s58 = ssub.s32 %s54, %s56
      %s59 = sor.u32 %s57, %s58
      %p60 = scmp.eq.s32.totalorder %s59, 0
      %s62 = sadd.s32 %s61, 1
      %s63 = scalar_select %p60, %s61, %s62
      %p66 = pneg %p60
      %p67 = scmp.eq.s32.totalorder %s12, 1
      %p68 = por %p66, %p67
      %p69 = scmp.ne.s32.totalorder %s61, %s64
      %p70 = scmp.eq.s32.totalorder %s12, 0
      %p71 = por %p69, %p70
      %p72 = scmp.ne.s32.totalorder %s61, %s64
      %p73 = scmp.eq.s32.totalorder %s17, 1
      %p74 = por %p72, %p73
      %p75 = scmp.ne.s32.totalorder %s64, %s65
      %p76 = scmp.eq.s32.totalorder %s17, 0
      %p77 = por %p75, %p76
      %p78 = scmp.ne.s32.totalorder %s64, %s65
      %p79 = scmp.eq.s32.totalorder %s18, 1
      %p80 = por %p78, %p79
      %p82 = scmp.ne.s32.totalorder %s65, %s81
      %p83 = scmp.eq.s32.totalorder %s18, 0
      %p84 = por %p82, %p83
      %p85 = scmp.lt.s32.totalorder %s20, 0
      %s86 = scalar_select %p85, %s20, 0
      %p87 = scmp.lt.s32.totalorder %s27, 0
      %s88 = scalar_select %p87, %s27, 0
      %s89 = ssub.s32 %s19, %s31
      %s90 = ssub.s32 %s86, %s88
      %s91 = sor.u32 %s89, %s90
      %p92 = scmp.eq.s32.totalorder %s91, 0
      %s94 = sadd.s32 %s93, 1
      %s95 = scalar_select %p92, %s93, %s94
      %p98 = pneg %p92
      %p99 = scmp.eq.s32.totalorder %s12, 1
      %p100 = por %p98, %p99
      %p101 = scmp.ne.s32.totalorder %s93, %s96
      %p102 = scmp.eq.s32.totalorder %s12, 0
      %p103 = por %p101, %p102
      %p104 = scmp.ne.s32.totalorder %s93, %s96
      %p105 = scmp.eq.s32.totalorder %s17, 1
      %p106 = por %p104, %p105
      %p107 = scmp.ne.s32.totalorder %s96, %s97
      %p108 = scmp.eq.s32.totalorder %s17, 0
      %p109 = por %p107, %p108
      %p110 = scmp.ne.s32.totalorder %s96, %s97
      %p111 = scmp.eq.s32.totalorder %s18, 1
      %p112 = por %p110, %p111
      %p114 = scmp.ne.s32.totalorder %s97, %s113
      %p115 = scmp.eq.s32.totalorder %s18, 0
      %p116 = por %p114, %p115
      %s118 = sadd.s32 %s117, 1
      %p121 = scmp.eq.s32.totalorder %s12, 1
      %p122 = scmp.ne.s32.totalorder %s117, %s119
      %p123 = scmp.eq.s32.totalorder %s12, 0
      %p124 = por %p122, %p123
      %p125 = scmp.ne.s32.totalorder %s117, %s119
      %p126 = scmp.eq.s32.totalorder %s17, 1
      %p127 = por %p125, %p126
      %p128 = scmp.ne.s32.totalorder %s119, %s120
      %p129 = scmp.eq.s32.totalorder %s17, 0
      %p130 = por %p128, %p129
      %p131 = scmp.ne.s32.totalorder %s119, %s120
      %p132 = scmp.eq.s32.totalorder %s18, 1
      %p133 = por %p131, %p132
      %p135 = scmp.ne.s32.totalorder %s120, %s134
      %p136 = scmp.eq.s32.totalorder %s18, 0
      %p137 = por %p135, %p136
      %s139 = sadd.s32 %s138, 1
      %p142 = scmp.eq.s32.totalorder %s12, 1
      %p143 = scmp.ne.s32.totalorder %s138, %s140
      %p144 = scmp.eq.s32.totalorder %s12, 0
      %p145 = por %p143, %p144
      %p146 = scmp.ne.s32.totalorder %s138, %s140
      %p147 = scmp.eq.s32.totalorder %s17, 1
      %p148 = por %p146, %p147
      %p149 = scmp.ne.s32.totalorder %s140, %s141
      %p150 = scmp.eq.s32.totalorder %s17, 0
      %p151 = por %p149, %p150
      %p152 = scmp.ne.s32.totalorder %s140, %s141
      %p153 = scmp.eq.s32.totalorder %s18, 1
      %p154 = por %p152, %p153
      %p156 = scmp.ne.s32.totalorder %s141, %s155
      %p157 = scmp.eq.s32.totalorder %s18, 0
      %p158 = por %p156, %p157
      %s159 = ssub.s32 %s19, %s31
      %s160 = ssub.s32 %s20, %s27
      %s161 = sor.u32 %s159, %s160
      %p162 = scmp.eq.s32.totalorder %s161, 0
      %s164 = sadd.s32 %s163, 1
      %s165 = scalar_select %p162, %s163, %s164
      %p168 = pneg %p162
      %p169 = scmp.eq.s32.totalorder %s12, 1
      %p170 = por %p168, %p169
      %p171 = scmp.ne.s32.totalorder %s163, %s166
      %p172 = scmp.eq.s32.totalorder %s12, 0
      %p173 = por %p171, %p172
      %p174 = scmp.ne.s32.totalorder %s163, %s166
      %p175 = scmp.eq.s32.totalorder %s17, 1
      %p176 = por %p174, %p175
      %p177 = scmp.ne.s32.totalorder %s166, %s167
      %p178 = scmp.eq.s32.totalorder %s17, 0
      %p179 = por %p177, %p178
      %p180 = scmp.ne.s32.totalorder %s166, %s167
      %p181 = scmp.eq.s32.totalorder %s18, 1
      %p182 = por %p180, %p181
      %p184 = scmp.ne.s32.totalorder %s167, %s183
      %p185 = scmp.eq.s32.totalorder %s18, 0
      %p186 = por %p184, %p185
      %p187 = scmp.le.s32.totalorder 1, %s12
      %p188 = scmp.lt.s32.totalorder %s12, 3
      %p189 = pnand %p187, %p188
      %p190 = pneg %p189
      // Predicated region
      $region9: #{tpu_custom_call.1} parent=5 // pred_check
        _
      $region10: #{tpu_custom_call.1} parent=5 // pred_check_branch
        %192 = sbr.rel (%p189) target = $region12
      $region11: #{tpu_custom_call.1} parent=5 // pred_region
        %s193 = ssub.s32 %s12, 1
        // Predicated region
        $region13: #{tpu_custom_call.1} parent=11 // pred_check
          %p194 = pneg %p45
        $region14: #{tpu_custom_call.1} parent=11 // pred_check_branch
          %196 = sbr.rel (%p194) target = $region16
        $region15: #{tpu_custom_call.1} parent=11 // pred_region
          %s198 = ssub.s32 16, 16
          %199 = vsyncadd [#allocation3], %s198
          %s201 = sshll.u32 %s0, 4
          %s202 = int_to_ptr.vmem [resolvable:$true] %s201
          %204 = dma.vmem_to_smem %s202, 16, [#allocation2], [#allocation3]
        $region16: #{tpu_custom_call.1} parent=11 // pred_fallthru
          _
        // Predicated region
        $region17: #{tpu_custom_call.1} parent=11 // pred_check
          %p205 = pneg %p130
        $region18: #{tpu_custom_call.1} parent=11 // pred_check_branch
          %207 = sbr.rel (%p205) target = $region20
        $region19: #{tpu_custom_call.1} parent=11 // pred_region
          _
        $region20: #{tpu_custom_call.1} parent=11 // pred_fallthru
          _
        // Predicated region
        $region21: #{tpu_custom_call.1} parent=11 // pred_check
          %p208 = pneg %p151
        $region22: #{tpu_custom_call.1} parent=11 // pred_check_branch
          %210 = sbr.rel (%p208) target = $region24
        $region23: #{tpu_custom_call.1} parent=11 // pred_region
          _
        $region24: #{tpu_custom_call.1} parent=11 // pred_fallthru
          _
      $region12: #{tpu_custom_call.1} parent=5 // pred_fallthru
        _
      %p211 = scmp.lt.s32.totalorder %s12, 2
      // Predicated region
      $region25: #{tpu_custom_call.1} parent=5 // pred_check
        %p212 = pneg %p211
      $region26: #{tpu_custom_call.1} parent=5 // pred_check_branch
        %214 = sbr.rel (%p212) target = $region28
      $region27: #{tpu_custom_call.1} parent=5 // pred_region
        // Predicated region
        $region29: #{tpu_custom_call.1} parent=27 // pred_check
          %p215 = pneg %p71
        $region30: #{tpu_custom_call.1} parent=27 // pred_check_branch
          %217 = sbr.rel (%p215) target = $region32
        $region31: #{tpu_custom_call.1} parent=27 // pred_region
          %p218 = scmp.lt.s32.totalorder %s20, 0
          %s219 = scalar_select %p218, %s20, 0
          %s220 = smul.u32 2, %s219
          %s221 = ssub.s32 1, %s220
          %s222 = smul.u32 128, %s221
          %p223 = scmp.lt.s32.totalorder %s19, 1
          %s224 = scalar_select %p223, %s19, 1
          %p225 = scmp.lt.s32.totalorder %s220, 0
          %s226 = scalar_select %p225, %s220, 0
          %s227 = sadd.s32 %s226, %s224
          %s228 = smul.addr %s227, 8
          %s229 = scalar_lea.vmem %s1, %s228
          %p230 = scmp.lt.s32.totalorder %s20, 0
          %s231 = scalar_select %p230, %s20, 0
          %s232 = smul.u32 2, %s231
          %s233 = ssub.s32 1, %s232
          %s234 = smul.u32 128, %s233
        $region32: #{tpu_custom_call.1} parent=27 // pred_fallthru
          _
        // Predicated region
        $region33: #{tpu_custom_call.1} parent=27 // pred_check
          %p235 = pneg %p103
        $region34: #{tpu_custom_call.1} parent=27 // pred_check_branch
          %237 = sbr.rel (%p235) target = $region36
        $region35: #{tpu_custom_call.1} parent=27 // pred_region
          %p238 = scmp.lt.s32.totalorder %s20, 0
          %s239 = scalar_select %p238, %s20, 0
          %s240 = smul.u32 2, %s239
          %s241 = ssub.s32 1, %s240
          %s242 = smul.u32 128, %s241
          %p243 = scmp.lt.s32.totalorder %s19, 1
          %s244 = scalar_select %p243, %s19, 1
          %p245 = scmp.lt.s32.totalorder %s240, 0
          %s246 = scalar_select %p245, %s240, 0
          %s247 = sadd.s32 %s246, %s244
          %s248 = smul.addr %s247, 8
          %s249 = scalar_lea.vmem %s2, %s248
          %p250 = scmp.lt.s32.totalorder %s20, 0
          %s251 = scalar_select %p250, %s20, 0
          %s252 = smul.u32 2, %s251
          %s253 = ssub.s32 1, %s252
          %s254 = smul.u32 128, %s253
        $region36: #{tpu_custom_call.1} parent=27 // pred_fallthru
          _
      $region28: #{tpu_custom_call.1} parent=5 // pred_fallthru
        _
      %p255 = scmp.le.s32.totalorder 1, %s12
      %p256 = scmp.lt.s32.totalorder %s12, 3
      %p257 = pnand %p255, %p256
      %p258 = pneg %p257
      // Predicated region
      $region37: #{tpu_custom_call.1} parent=5 // pred_check
        _
      $region38: #{tpu_custom_call.1} parent=5 // pred_check_branch
        %260 = sbr.rel (%p257) target = $region40
      $region39: #{tpu_custom_call.1} parent=5 // pred_region
        %s261 = ssub.s32 %s12, 1
        // Predicated region
        $region41: #{tpu_custom_call.1} parent=39 // pred_check
          %p262 = pneg %p45
        $region42: #{tpu_custom_call.1} parent=39 // pred_check_branch
          %264 = sbr.rel (%p262) target = $region44
        $region43: #{tpu_custom_call.1} parent=39 // pred_region
          %265 = dma.done [#allocation3], 16
        $region44: #{tpu_custom_call.1} parent=39 // pred_fallthru
          _
        %266 = sfence
        %p267 = pneg %p45
        %p268 = pneg %p42
        %p269 = scmp.lt.s32.totalorder %s22, 0
        %s270 = scalar_select %p269, %s22, 0
        %s271 = smul.u32 2, %s270
        %s272 = ssub.s32 1, %s271
        %s273 = smul.u32 128, %s272
        %p274 = scmp.lt.s32.totalorder %s21, 1
        %s275 = scalar_select %p274, %s21, 1
        %p276 = scmp.lt.s32.totalorder %s271, 0
        %s277 = scalar_select %p276, %s271, 0
        %s278 = sadd.s32 %s277, %s275
        %s279 = smul.addr %s278, 8
        %s280 = scalar_lea.vmem %s1, %s279
        %p281 = pneg %p77
        %p282 = pneg %p74
        %p283 = scmp.lt.s32.totalorder %s22, 0
        %s284 = scalar_select %p283, %s22, 0
        %s285 = smul.u32 2, %s284
        %s286 = ssub.s32 1, %s285
        %s287 = smul.u32 128, %s286
        %p288 = scmp.lt.s32.totalorder %s21, 1
        %s289 = scalar_select %p288, %s21, 1
        %p290 = scmp.lt.s32.totalorder %s285, 0
        %s291 = scalar_select %p290, %s285, 0
        %s292 = sadd.s32 %s291, %s289
        %s293 = smul.addr %s292, 8
        %s294 = scalar_lea.vmem %s2, %s293
        %p295 = pneg %p109
        %p296 = pneg %p106
        %p297 = pneg %p130
        %p298 = pneg %p127
        %p299 = pneg %p151
        %p300 = pneg %p148
        %p301 = pneg %p179
        %p302 = pneg %p176
        %s303 = smul.u32 2, %s22
        %p304 = scmp.lt.s32.totalorder %s21, 1
        %s305 = scalar_select %p304, %s21, 1
        %p306 = scmp.lt.s32.totalorder %s303, 1
        %s307 = scalar_select %p306, %s303, 1
        %s308 = smul.addr %s305, 2
        %s309 = sadd.s32 %s307, %s308
        %s310 = smul.addr %s309, 8
        %s311 = scalar_lea.vmem %s5, %s310
        %p312 = scmp.lt.s32.totalorder %s22, 0
        %s313 = scalar_select %p312, %s22, 0
        %s314 = smul.u32 2, %s313
        %s315 = ssub.s32 1, %s314
        %s316 = smul.u32 128, %s315
        %p317 = scmp.lt.s32.totalorder %s21, 1
        %s318 = scalar_select %p317, %s21, 1
        %p319 = scmp.lt.s32.totalorder %s314, 0
        %s320 = scalar_select %p319, %s314, 0
        %s321 = sadd.s32 %s320, %s318
        %s322 = smul.addr %s321, 8
        %s323 = scalar_lea.vmem %s1, %s322
        %p324 = scmp.lt.s32.totalorder %s22, 0
        %s325 = scalar_select %p324, %s22, 0
        %s326 = smul.u32 2, %s325
        %s327 = ssub.s32 1, %s326
        %s328 = smul.u32 128, %s327
        %p329 = scmp.lt.s32.totalorder %s22, 0
        %s330 = scalar_select %p329, %s22, 0
        %s331 = smul.u32 2, %s330
        %s332 = ssub.s32 1, %s331
        %s333 = smul.u32 128, %s332
        %p334 = scmp.lt.s32.totalorder %s21, 1
        %s335 = scalar_select %p334, %s21, 1
        %p336 = scmp.lt.s32.totalorder %s331, 0
        %s337 = scalar_select %p336, %s331, 0
        %s338 = sadd.s32 %s337, %s335
        %s339 = smul.addr %s338, 8
        %s340 = scalar_lea.vmem %s2, %s339
        %p341 = scmp.lt.s32.totalorder %s22, 0
        %s342 = scalar_select %p341, %s22, 0
        %s343 = smul.u32 2, %s342
        %s344 = ssub.s32 1, %s343
        %s345 = smul.u32 128, %s344
        %s346 = smul.u32 2, %s22
        %p347 = scmp.lt.s32.totalorder %s21, 1
        %s348 = scalar_select %p347, %s21, 1
        %p349 = scmp.lt.s32.totalorder %s346, 1
        %s350 = scalar_select %p349, %s346, 1
        %s351 = smul.addr %s348, 2
        %s352 = sadd.s32 %s350, %s351
        %s353 = smul.addr %s352, 8
        %s354 = scalar_lea.vmem %s5, %s353
        %s355 = smul.u32 2, %s22
        %v356 = vld [vmem:[%s3] sm:$0x1]
        %v357 = vld [vmem:[%s3 + $0x1] sm:$0x1]
        %s358 = smul.u32 %s22, 16
        %p359 = scmp.lt.s32.totalorder %s358, 8
        // Predicated region
        $region45: #{tpu_custom_call.1} parent=39 // pred_check
          %p360 = pneg %p359
        $region46: #{tpu_custom_call.1} parent=39 // pred_check_branch
          %362 = sbr.rel (%p360) target = $region48
        $region47: #{tpu_custom_call.1} parent=39 // pred_region
          %v363 = vld [vmem:[%s3 + $0x2] sm:$0x1]
          %v364 = vld [vmem:[%s3 + $0x3] sm:$0x1]
          %v365 = vld [vmem:[%s3 + $0x4] sm:$0x1]
          %v366 = vld [vmem:[%s3 + $0x5] sm:$0x1]
          %v367 = vld [vmem:[%s4] sm:$0xff]
          %v368 = vld [vmem:[%s4 + $0x8] sm:$0xff]
          %v369 = vld [vmem:[%s4 + $0x10] sm:$0xff]
          %v370 = vld [vmem:[%s4 + $0x18] sm:$0xff]
          %v371 = vld [vmem:[%s4 + $0x20] sm:$0xff]
          %v372 = vld [vmem:[%s4 + $0x28] sm:$0xff]
          %v373 = vld [vmem:[%s4 + $0x30] sm:$0xff]
          %v374 = vld [vmem:[%s4 + $0x38] sm:$0xff]
          %v375 = vld [vmem:[%s323] sm:$0xff]
          %v376 = vld [vmem:[%s323 + $0x8] sm:$0xff]
          %v377 = vld [vmem:[%s340] sm:$0xff]
          %v378 = vld [vmem:[%s340 + $0x8] sm:$0xff]
          %380 = vset.pattern.permute.xlu0 0
          %381 = vperm.xlu0 %380, %v375
          %v382 = vpop.permute.xlu0 %381
          %385 = vset.pattern.permute.xlu0 0
          %386 = vperm.xlu0 %385, %v376
          %v387 = vpop.permute.xlu0 %386
          %v389 = vlaneseq
          %v390 = vshrl.u32 %v389, 7
          %v391 = vsub.s32 0, %v390
          %v392 = vrot.slane %v356, %v391
          %v393 = vmul.f32 %v382, %v392
          %v394 = vmul.f32 %v387, %v392
          %v395 = vlaneseq
          %v396 = vshrl.u32 %v395, 7
          %v397 = vsub.s32 0, %v396
          %v398 = vrot.slane %v357, %v397
          %v399 = vadd.f32 %v393, %v398
          %v400 = vadd.f32 %v394, %v398
          %v401 = vand.u32 2147483647, %v399
          %vm402 = vcmp.le.f32.partialorder %v401, 0.7853982
          %vm403 = vcmp.lt.s32.totalorder %v399, 0
          %v404 = vand.u32 %v399, 2139095040
          %v405 = vshrl.u32 %v404, 23
          %v406 = vsub.s32 %v405, 127
          %v407 = vand.u32 2147483647, %v399
          %v408 = vand.u32 %v407, 8388607
          %v409 = vor.u32 %v408, 8388608
          %v410 = vsub.s32 0, %v409
          %v411 = vadd.s32 %v406, 1
          %vm412 = vcmp.gt.s32.totalorder %v411, 0
          %v413 = vsel %vm412, %v411, 0
          %v414 = vshrl.u32 %v413, 5
          %v415 = vand.u32 %v413, 31
          %v416 = vsub.s32 32, %v415
          %v417 = vshrl.u32 683565275, %v416
          %v418 = vshll.u32 683565275, %v415
          %v419 = vshrl.u32 2475754826, %v416
          %v420 = vor.u32 %v418, %v419
          %v421 = vshll.u32 2475754826, %v415
          %v422 = vshrl.u32 2131351028, %v416
          %v423 = vor.u32 %v421, %v422
          %v424 = vshll.u32 2131351028, %v415
          %v425 = vshrl.u32 2102212464, %v416
          %v426 = vor.u32 %v424, %v425
          %v427 = vshll.u32 2102212464, %v415
          %v428 = vshrl.u32 920167782, %v416
          %v429 = vor.u32 %v427, %v428
          %v430 = vshll.u32 920167782, %v415
          %v431 = vshrl.u32 1326507024, %v416
          %v432 = vor.u32 %v430, %v431
          %vm433 = vcmp.lt.s32.totalorder %v414, 1
          %vm434 = vcmp.lt.s32.totalorder %v414, 2
          %vm435 = vcmp.lt.s32.totalorder %v414, 3
          %vm436 = vcmp.lt.s32.totalorder %v414, 4
          %v437 = vsel %vm433, %v417, %v420
          %v438 = vsel %vm436, %v426, 2102212464
          %v439 = vsel %vm435, %v423, %v438
          %v440 = vsel %vm434, %v437, %v439
          %v441 = vsel %vm433, %v420, %v423
          %v442 = vsel %vm436, %v429, 920167782
          %v443 = vsel %vm435, %v426, %v442
          %v444 = vsel %vm434, %v441, %v443
          %v445 = vsel %vm433, %v423, %v426
          %v446 = vsel %vm436, %v432, 1326507024
          %v447 = vsel %vm435, %v429, %v446
          %v448 = vsel %vm434, %v445, %v447
          %v449 = vshll.u32 %v409, 8
          %v450 = vmul.u32.u64.compose %v449, %v448
          %v451 = vextract.low.u32 %v450
          %v452 = vextract.high.u32 %v450
          %v453 = vmul.u32.u64.compose %v449, %v444
          %v454 = vextract.low.u32 %v453
          %v455 = vextract.high.u32 %v453
          %v456 = vmul.u32 %v449, %v440
          %v457 = vadd.s32 %v452, %v454
          %vm458 = vc.u32 %v452, %v454
          %v459 = vadd.s32 %v455, 1
          %v460 = vsel %vm458, %v459, %v455
          %v461 = vadd.s32 %v456, %v460
          %v462 = vadd.s32 %v461, 536870912
          %v463 = vshrl.u32 %v462, 30
          %v464 = vshll.u32 %v463, 30
          %v465 = vsub.s32 %v461, %v464
          %vm466 = vcmp.lt.s32.totalorder %v465, 0
          %v467 = vsub.s32 0, %v465
          %v468 = vsel %vm466, %v467, %v465
          %v469 = vclz %v468
          %v470 = vsub.s32 %v469, 2
          %vm471 = vcmp.gt.s32.totalorder 0, %v470
          %v472 = vsel %vm471, 0, %v470
          %v473 = vsub.s32 32, %v472
          %v474 = vshll.u32 %v465, %v472
          %v475 = vshrl.u32 %v457, %v473
          %v476 = vor.u32 %v474, %v475
          %v477 = vsub.s32 4294967266, %v472
          %v478 = vadd.s32 %v477, 127
          %v479 = vshll.u32 %v478, 23
          %v480 = vor.u32 4788187, %v479
          %v481 = vand.u32 2147483647, %v480
          %v483 = vcvt.s32.f32 %v476
          %v484 = vmul.f32 %v483, %v481
          %v485 = vxor.u32 %v484, 2147483648
          %v486 = vsel %vm403, %v485, %v484
          %v487 = vsub.s32 4, %v463
          %v488 = vsel %vm403, %v487, %v463
          %v489 = vsel %vm402, %v399, %v486
          %v490 = vsel %vm402, 0, %v488
          %v491 = vcosq.f32.pop %v489
          %v492 = vsinq.f32.pop %v489
          %vm493 = vweird.f32 %v399
          %v494 = vadd.s32 %v490, 3
          %v495 = vand.u32 %v494, 3
          %vm496 = vcmp.lt.s32.totalorder %v495, 2
          %vm497 = vcmp.eq.s32.totalorder %v495, 0
          %v498 = vxor.u32 %v492, 2147483648
          %v499 = vsel %vm497, %v491, %v498
          %vm500 = vcmp.eq.s32.totalorder %v495, 2
          %v501 = vxor.u32 %v491, 2147483648
          %v502 = vsel %vm500, %v501, %v492
          %v503 = vsel %vm496, %v499, %v502
          %v504 = vsel %vm493, nan, %v503
          %v505 = vand.u32 2147483647, %v400
          %vm506 = vcmp.le.f32.partialorder %v505, 0.7853982
          %vm507 = vcmp.lt.s32.totalorder %v400, 0
          %v508 = vand.u32 %v400, 2139095040
          %v509 = vshrl.u32 %v508, 23
          %v510 = vsub.s32 %v509, 127
          %v511 = vand.u32 2147483647, %v400
          %v512 = vand.u32 %v511, 8388607
          %v513 = vor.u32 %v512, 8388608
          %v514 = vsub.s32 0, %v513
          %v515 = vadd.s32 %v510, 1
          %vm516 = vcmp.gt.s32.totalorder %v515, 0
          %v517 = vsel %vm516, %v515, 0
          %v518 = vshrl.u32 %v517, 5
          %v519 = vand.u32 %v517, 31
          %v520 = vsub.s32 32, %v519
          %v521 = vshrl.u32 683565275, %v520
          %v522 = vshll.u32 683565275, %v519
          %v523 = vshrl.u32 2475754826, %v520
          %v524 = vor.u32 %v522, %v523
          %v525 = vshll.u32 2475754826, %v519
          %v526 = vshrl.u32 2131351028, %v520
          %v527 = vor.u32 %v525, %v526
          %v528 = vshll.u32 2131351028, %v519
          %v529 = vshrl.u32 2102212464, %v520
          %v530 = vor.u32 %v528, %v529
          %v531 = vshll.u32 2102212464, %v519
          %v532 = vshrl.u32 920167782, %v520
          %v533 = vor.u32 %v531, %v532
          %v534 = vshll.u32 920167782, %v519
          %v535 = vshrl.u32 1326507024, %v520
          %v536 = vor.u32 %v534, %v535
          %vm537 = vcmp.lt.s32.totalorder %v518, 1
          %vm538 = vcmp.lt.s32.totalorder %v518, 2
          %vm539 = vcmp.lt.s32.totalorder %v518, 3
          %vm540 = vcmp.lt.s32.totalorder %v518, 4
          %v541 = vsel %vm537, %v521, %v524
          %v542 = vsel %vm540, %v530, 2102212464
          %v543 = vsel %vm539, %v527, %v542
          %v544 = vsel %vm538, %v541, %v543
          %v545 = vsel %vm537, %v524, %v527
          %v546 = vsel %vm540, %v533, 920167782
          %v547 = vsel %vm539, %v530, %v546
          %v548 = vsel %vm538, %v545, %v547
          %v549 = vsel %vm537, %v527, %v530
          %v550 = vsel %vm540, %v536, 1326507024
          %v551 = vsel %vm539, %v533, %v550
          %v552 = vsel %vm538, %v549, %v551
          %v553 = vshll.u32 %v513, 8
          %v554 = vmul.u32.u64.compose %v553, %v552
          %v555 = vextract.low.u32 %v554
          %v556 = vextract.high.u32 %v554
          %v557 = vmul.u32.u64.compose %v553, %v548
          %v558 = vextract.low.u32 %v557
          %v559 = vextract.high.u32 %v557
          %v560 = vmul.u32 %v553, %v544
          %v561 = vadd.s32 %v556, %v558
          %vm562 = vc.u32 %v556, %v558
          %v563 = vadd.s32 %v559, 1
          %v564 = vsel %vm562, %v563, %v559
          %v565 = vadd.s32 %v560, %v564
          %v566 = vadd.s32 %v565, 536870912
          %v567 = vshrl.u32 %v566, 30
          %v568 = vshll.u32 %v567, 30
          %v569 = vsub.s32 %v565, %v568
          %vm570 = vcmp.lt.s32.totalorder %v569, 0
          %v571 = vsub.s32 0, %v569
          %v572 = vsel %vm570, %v571, %v569
          %v573 = vclz %v572
          %v574 = vsub.s32 %v573, 2
          %vm575 = vcmp.gt.s32.totalorder 0, %v574
          %v576 = vsel %vm575, 0, %v574
          %v577 = vsub.s32 32, %v576
          %v578 = vshll.u32 %v569, %v576
          %v579 = vshrl.u32 %v561, %v577
          %v580 = vor.u32 %v578, %v579
          %v581 = vsub.s32 4294967266, %v576
          %v582 = vadd.s32 %v581, 127
          %v583 = vshll.u32 %v582, 23
          %v584 = vor.u32 4788187, %v583
          %v585 = vand.u32 2147483647, %v584
          %v587 = vcvt.s32.f32 %v580
          %v588 = vmul.f32 %v587, %v585
          %v589 = vxor.u32 %v588, 2147483648
          %v590 = vsel %vm507, %v589, %v588
          %v591 = vsub.s32 4, %v567
          %v592 = vsel %vm507, %v591, %v567
          %v593 = vsel %vm506, %v400, %v590
          %v594 = vsel %vm506, 0, %v592
          %v595 = vcosq.f32.pop %v593
          %v596 = vsinq.f32.pop %v593
          %vm597 = vweird.f32 %v400
          %v598 = vadd.s32 %v594, 3
          %v599 = vand.u32 %v598, 3
          %vm600 = vcmp.lt.s32.totalorder %v599, 2
          %vm601 = vcmp.eq.s32.totalorder %v599, 0
          %v602 = vxor.u32 %v596, 2147483648
          %v603 = vsel %vm601, %v595, %v602
          %vm604 = vcmp.eq.s32.totalorder %v599, 2
          %v605 = vxor.u32 %v595, 2147483648
          %v606 = vsel %vm604, %v605, %v596
          %v607 = vsel %vm600, %v603, %v606
          %v608 = vsel %vm597, nan, %v607
          %v609 = vlaneseq
          %v610 = vshrl.u32 %v609, 7
          %v611 = vsub.s32 0, %v610
          %v612 = vrot.slane %v365, %v611
          %vm613 = vcmask 261120
          %v615 = vsel %vm613, %v504, 0
          %v618 = vsel %vm613, %v608, 0
          %620 = vmatprep.subr.mxu0 0.0
          %621 = vmatpush1.msra.mxu0 %v367
          %622 = vmatprep.subr.mxu0 0.0
          %623 = vmatpush1.msra.mxu0 %v368
          %624 = vmatprep.subr.mxu0 0.0
          %625 = vmatpush1.msra.mxu0 %v369
          %626 = vmatprep.subr.mxu0 0.0
          %627 = vmatpush1.msra.mxu0 %v370
          %628 = vmatprep.subr.mxu0 0.0
          %629 = vmatpush1.msra.mxu0 0.0
          %630 = vmatprep.subr.mxu0 0.0
          %631 = vmatpush1.msra.mxu0 0.0
          %632 = vmatprep.subr.mxu0 0.0
          %633 = vmatpush1.msra.mxu0 0.0
          %634 = vmatprep.subr.mxu0 0.0
          %635 = vmatpush1.msra.mxu0 0.0
          %636 = vmatprep.subr.mxu0 0.0
          %637 = vmatpush1.msra.mxu0 0.0
          %638 = vmatprep.subr.mxu0 0.0
          %639 = vmatpush1.msra.mxu0 0.0
          %640 = vmatprep.subr.mxu0 0.0
          %641 = vmatpush1.msra.mxu0 0.0
          %642 = vmatprep.subr.mxu0 0.0
          %643 = vmatpush1.msra.mxu0 0.0
          %644 = vmatprep.subr.mxu0 0.0
          %645 = vmatpush1.msra.mxu0 0.0
          %646 = vmatprep.subr.mxu0 0.0
          %647 = vmatpush1.msra.mxu0 0.0
          %648 = vmatprep.subr.mxu0 0.0
          %649 = vmatpush1.msra.mxu0 0.0
          %650 = vmatprep.subr.mxu0 0.0
          %651 = vmatpush1.msra.mxu0 0.0
          %652 = vmatprep.subr.mxu0 0.0
          %653 = vmatpush1.msra.mxu0 0.0
          %654 = vmatprep.subr.mxu0 0.0
          %655 = vmatpush1.msra.mxu0 0.0
          %656 = vmatprep.subr.mxu0 0.0
          %657 = vmatpush1.msra.mxu0 0.0
          %658 = vmatprep.subr.mxu0 0.0
          %659 = vmatpush1.msra.mxu0 0.0
          %660 = vmatprep.subr.mxu0 0.0
          %661 = vmatpush1.msra.mxu0 0.0
          %662 = vmatprep.subr.mxu0 0.0
          %663 = vmatpush1.msra.mxu0 0.0
          %664 = vmatprep.subr.mxu0 0.0
          %665 = vmatpush1.msra.mxu0 0.0
          %666 = vmatprep.subr.mxu0 0.0
          %667 = vmatpush1.msra.mxu0 0.0
          %668 = vmatprep.subr.mxu0 0.0
          %669 = vmatpush1.msra.mxu0 0.0
          %670 = vmatprep.subr.mxu0 0.0
          %671 = vmatpush1.msra.mxu0 0.0
          %672 = vmatprep.subr.mxu0 0.0
          %673 = vmatpush1.msra.mxu0 0.0
          %674 = vmatprep.subr.mxu0 0.0
          %675 = vmatpush1.msra.mxu0 0.0
          %676 = vmatprep.subr.mxu0 0.0
          %677 = vmatpush1.msra.mxu0 0.0
          %678 = vmatprep.subr.mxu0 0.0
          %679 = vmatpush1.msra.mxu0 0.0
          %680 = vmatprep.subr.mxu0 0.0
          %681 = vmatpush1.msra.mxu0 0.0
          %682 = vmatprep.subr.mxu0 0.0
          %683 = vmatpush1.msra.mxu0 0.0
          %684 = vmatprep.mubr.f32.mxu0 0.0
          %685 = vmatmul.mubr.f32.gmra.mrb[0].mxu0 %v615
          %v686 = vpop.f32.mrb[0].mxu0
          %v687 = vadd.f32 %v612, %v686
          %v688 = vpop.f32.mrb[0].mxu0
          %689 = vmatprep.mubr.f32.mxu0 0.0
          %690 = vmatmul.mubr.f32.gmra.mrb[0].mxu0 %v618
          %v691 = vpop.f32.mrb[0].mxu0
          %v692 = vadd.f32 %v612, %v691
          %v693 = vpop.f32.mrb[0].mxu0
          %694 = vdwg.mxu0
          %v695 = vmul.f32 %v687, %v687
          %v696 = vmul.f32 %v692, %v692
          %v697 = vmul.f32 %v687, %v695
          %v698 = vmul.f32 %v692, %v696
          %v699 = vmul.f32 %v697, 0.044715
          %v700 = vmul.f32 %v698, 0.044715
          %v701 = vadd.f32 %v687, %v699
          %v702 = vadd.f32 %v692, %v700
          %v703 = vmul.f32 %v701, 0.7978846
          %v704 = vmul.f32 %v702, 0.7978846
          %v705 = vtanh.pop %v703
          %v706 = vtanh.pop %v704
          %v707 = vadd.f32 %v705, 1.0
          %v708 = vadd.f32 %v706, 1.0
          %v709 = vmul.f32 %v707, 0.5
          %v710 = vmul.f32 %v708, 0.5
          %v711 = vmul.f32 %v687, %v709
          %v712 = vmul.f32 %v692, %v710
          %v713 = vlaneseq
          %v714 = vshrl.u32 %v713, 7
          %v715 = vsub.s32 0, %v714
          %v716 = vrot.slane %v366, %v715
          %v718 = vsel %vm613, %v711, 0
          %v721 = vsel %vm613, %v712, 0
          %723 = vmatprep.subr.mxu0 0.0
          %724 = vmatpush1.msra.mxu0 %v371
          %725 = vmatprep.subr.mxu0 0.0
          %726 = vmatpush1.msra.mxu0 %v372
          %727 = vmatprep.subr.mxu0 0.0
          %728 = vmatpush1.msra.mxu0 %v373
          %729 = vmatprep.subr.mxu0 0.0
          %730 = vmatpush1.msra.mxu0 %v374
          %731 = vmatprep.subr.mxu0 0.0
          %732 = vmatpush1.msra.mxu0 0.0
          %733 = vmatprep.subr.mxu0 0.0
          %734 = vmatpush1.msra.mxu0 0.0
          %735 = vmatprep.subr.mxu0 0.0
          %736 = vmatpush1.msra.mxu0 0.0
          %737 = vmatprep.subr.mxu0 0.0
          %738 = vmatpush1.msra.mxu0 0.0
          %739 = vmatprep.subr.mxu0 0.0
          %740 = vmatpush1.msra.mxu0 0.0
          %741 = vmatprep.subr.mxu0 0.0
          %742 = vmatpush1.msra.mxu0 0.0
          %743 = vmatprep.subr.mxu0 0.0
          %744 = vmatpush1.msra.mxu0 0.0
          %745 = vmatprep.subr.mxu0 0.0
          %746 = vmatpush1.msra.mxu0 0.0
          %747 = vmatprep.subr.mxu0 0.0
          %748 = vmatpush1.msra.mxu0 0.0
          %749 = vmatprep.subr.mxu0 0.0
          %750 = vmatpush1.msra.mxu0 0.0
          %751 = vmatprep.subr.mxu0 0.0
          %752 = vmatpush1.msra.mxu0 0.0
          %753 = vmatprep.subr.mxu0 0.0
          %754 = vmatpush1.msra.mxu0 0.0
          %755 = vmatprep.subr.mxu0 0.0
          %756 = vmatpush1.msra.mxu0 0.0
          %757 = vmatprep.subr.mxu0 0.0
          %758 = vmatpush1.msra.mxu0 0.0
          %759 = vmatprep.subr.mxu0 0.0
          %760 = vmatpush1.msra.mxu0 0.0
          %761 = vmatprep.subr.mxu0 0.0
          %762 = vmatpush1.msra.mxu0 0.0
          %763 = vmatprep.subr.mxu0 0.0
          %764 = vmatpush1.msra.mxu0 0.0
          %765 = vmatprep.subr.mxu0 0.0
          %766 = vmatpush1.msra.mxu0 0.0
          %767 = vmatprep.subr.mxu0 0.0
          %768 = vmatpush1.msra.mxu0 0.0
          %769 = vmatprep.subr.mxu0 0.0
          %770 = vmatpush1.msra.mxu0 0.0
          %771 = vmatprep.subr.mxu0 0.0
          %772 = vmatpush1.msra.mxu0 0.0
          %773 = vmatprep.subr.mxu0 0.0
          %774 = vmatpush1.msra.mxu0 0.0
          %775 = vmatprep.subr.mxu0 0.0
          %776 = vmatpush1.msra.mxu0 0.0
          %777 = vmatprep.subr.mxu0 0.0
          %778 = vmatpush1.msra.mxu0 0.0
          %779 = vmatprep.subr.mxu0 0.0
          %780 = vmatpush1.msra.mxu0 0.0
          %781 = vmatprep.subr.mxu0 0.0
          %782 = vmatpush1.msra.mxu0 0.0
          %783 = vmatprep.subr.mxu0 0.0
          %784 = vmatpush1.msra.mxu0 0.0
          %785 = vmatprep.subr.mxu0 0.0
          %786 = vmatpush1.msra.mxu0 0.0
          %787 = vmatprep.mubr.f32.mxu0 0.0
          %788 = vmatmul.mubr.f32.gmra.mrb[0].mxu0 %v718
          %v789 = vpop.f32.mrb[0].mxu0
          %v790 = vadd.f32 %v716, %v789
          %v791 = vpop.f32.mrb[0].mxu0
          %792 = vmatprep.mubr.f32.mxu0 0.0
          %793 = vmatmul.mubr.f32.gmra.mrb[0].mxu0 %v721
          %v794 = vpop.f32.mrb[0].mxu0
          %v795 = vadd.f32 %v716, %v794
          %v796 = vpop.f32.mrb[0].mxu0
          %797 = vdwg.mxu0
          %799 = vset.pattern.permute.xlu0 0
          %800 = vperm.xlu0 %799, %v377
          %v801 = vpop.permute.xlu0 %800
          %804 = vset.pattern.permute.xlu0 0
          %805 = vperm.xlu0 %804, %v378
          %v806 = vpop.permute.xlu0 %805
          %v808 = vlaneseq
          %v809 = vshrl.u32 %v808, 7
          %v810 = vsub.s32 0, %v809
          %v811 = vrot.slane %v363, %v810
          %v812 = vmul.f32 %v801, %v811
          %v813 = vmul.f32 %v806, %v811
          %v814 = vlaneseq
          %v815 = vshrl.u32 %v814, 7
          %v816 = vsub.s32 0, %v815
          %v817 = vrot.slane %v364, %v816
          %v818 = vadd.f32 %v812, %v817
          %v819 = vadd.f32 %v813, %v817
          %v820 = vadd.f32 %v818, %v790
          %v821 = vadd.f32 %v819, %v795
          %822 = vst.msk [vmem:[%s354] sm:$0xff] %vm613, %v820
          %823 = vst.msk [vmem:[%s354 + $0x8] sm:$0xff] %vm613, %v821
        $region48: #{tpu_custom_call.1} parent=39 // pred_fallthru
          _
        %p824 = scmp.eq.s32.totalorder %s22, 0
        // Predicated region
        $region49: #{tpu_custom_call.1} parent=39 // pred_check
          %p825 = pneg %p824
        $region50: #{tpu_custom_call.1} parent=39 // pred_check_branch
          %827 = sbr.rel (%p825) target = $region52
        $region51: #{tpu_custom_call.1} parent=39 // pred_region
          %v828 = vld [vmem:[%s3 + $0x6] sm:$0x1]
          %v829 = vld [vmem:[%s3 + $0x7] sm:$0x1]
          %v830 = vld [vmem:[%s4 + $0x40] sm:$0xff]
          %v831 = vld [vmem:[%s4 + $0x48] sm:$0xff]
          %v832 = vld [vmem:[%s4 + $0x50] sm:$0xff]
          %v833 = vld [vmem:[%s4 + $0x58] sm:$0xff]
          %v834 = vld [vmem:[%s4 + $0x60] sm:$0xff]
          %v835 = vld [vmem:[%s4 + $0x68] sm:$0xff]
          %v836 = vld [vmem:[%s4 + $0x70] sm:$0xff]
          %v837 = vld [vmem:[%s4 + $0x78] sm:$0xff]
          %s838 = sld [smem:[#allocation2 + %s21]]
          %v839 = vstv %s838
          %v840 = vmul.f32 %v839, %v356
          %v841 = vadd.f32 %v840, %v357
          %v842 = vand.u32 2147483647, %v841
          %vm843 = vcmp.le.f32.partialorder %v842, 0.7853982
          %vm844 = vcmp.lt.s32.totalorder %v841, 0
          %v845 = vand.u32 %v841, 2139095040
          %v846 = vshrl.u32 %v845, 23
          %v847 = vsub.s32 %v846, 127
          %v848 = vand.u32 2147483647, %v841
          %v849 = vand.u32 %v848, 8388607
          %v850 = vor.u32 %v849, 8388608
          %v851 = vsub.s32 0, %v850
          %v852 = vadd.s32 %v847, 1
          %vm853 = vcmp.gt.s32.totalorder %v852, 0
          %v854 = vsel %vm853, %v852, 0
          %v855 = vshrl.u32 %v854, 5
          %v856 = vand.u32 %v854, 31
          %v857 = vsub.s32 32, %v856
          %v858 = vshrl.u32 683565275, %v857
          %v859 = vshll.u32 683565275, %v856
          %v860 = vshrl.u32 2475754826, %v857
          %v861 = vor.u32 %v859, %v860
          %v862 = vshll.u32 2475754826, %v856
          %v863 = vshrl.u32 2131351028, %v857
          %v864 = vor.u32 %v862, %v863
          %v865 = vshll.u32 2131351028, %v856
          %v866 = vshrl.u32 2102212464, %v857
          %v867 = vor.u32 %v865, %v866
          %v868 = vshll.u32 2102212464, %v856
          %v869 = vshrl.u32 920167782, %v857
          %v870 = vor.u32 %v868, %v869
          %v871 = vshll.u32 920167782, %v856
          %v872 = vshrl.u32 1326507024, %v857
          %v873 = vor.u32 %v871, %v872
          %vm874 = vcmp.lt.s32.totalorder %v855, 1
          %vm875 = vcmp.lt.s32.totalorder %v855, 2
          %vm876 = vcmp.lt.s32.totalorder %v855, 3
          %vm877 = vcmp.lt.s32.totalorder %v855, 4
          %v878 = vsel %vm874, %v858, %v861
          %v879 = vsel %vm877, %v867, 2102212464
          %v880 = vsel %vm876, %v864, %v879
          %v881 = vsel %vm875, %v878, %v880
          %v882 = vsel %vm874, %v861, %v864
          %v883 = vsel %vm877, %v870, 920167782
          %v884 = vsel %vm876, %v867, %v883
          %v885 = vsel %vm875, %v882, %v884
          %v886 = vsel %vm874, %v864, %v867
          %v887 = vsel %vm877, %v873, 1326507024
          %v888 = vsel %vm876, %v870, %v887
          %v889 = vsel %vm875, %v886, %v888
          %v890 = vshll.u32 %v850, 8
          %v891 = vmul.u32.u64.compose %v890, %v889
          %v892 = vextract.low.u32 %v891
          %v893 = vextract.high.u32 %v891
          %v894 = vmul.u32.u64.compose %v890, %v885
          %v895 = vextract.low.u32 %v894
          %v896 = vextract.high.u32 %v894
          %v897 = vmul.u32 %v890, %v881
          %v898 = vadd.s32 %v893, %v895
          %vm899 = vc.u32 %v893, %v895
          %v900 = vadd.s32 %v896, 1
          %v901 = vsel %vm899, %v900, %v896
          %v902 = vadd.s32 %v897, %v901
          %v903 = vadd.s32 %v902, 536870912
          %v904 = vshrl.u32 %v903, 30
          %v905 = vshll.u32 %v904, 30
          %v906 = vsub.s32 %v902, %v905
          %vm907 = vcmp.lt.s32.totalorder %v906, 0
          %v908 = vsub.s32 0, %v906
          %v909 = vsel %vm907, %v908, %v906
          %v910 = vclz %v909
          %v911 = vsub.s32 %v910, 2
          %vm912 = vcmp.gt.s32.totalorder 0, %v911
          %v913 = vsel %vm912, 0, %v911
          %v914 = vsub.s32 32, %v913
          %v915 = vshll.u32 %v906, %v913
          %v916 = vshrl.u32 %v898, %v914
          %v917 = vor.u32 %v915, %v916
          %v918 = vsub.s32 4294967266, %v913
          %v919 = vadd.s32 %v918, 127
          %v920 = vshll.u32 %v919, 23
          %v921 = vor.u32 4788187, %v920
          %v922 = vand.u32 2147483647, %v921
          %v924 = vcvt.s32.f32 %v917
          %v925 = vmul.f32 %v924, %v922
          %v926 = vxor.u32 %v925, 2147483648
          %v927 = vsel %vm844, %v926, %v925
          %v928 = vsub.s32 4, %v904
          %v929 = vsel %vm844, %v928, %v904
          %v930 = vsel %vm843, %v841, %v927
          %v931 = vsel %vm843, 0, %v929
          %v932 = vcosq.f32.pop %v930
          %v933 = vsinq.f32.pop %v930
          %vm934 = vweird.f32 %v841
          %v935 = vadd.s32 %v931, 3
          %v936 = vand.u32 %v935, 3
          %vm937 = vcmp.lt.s32.totalorder %v936, 2
          %vm938 = vcmp.eq.s32.totalorder %v936, 0
          %v939 = vxor.u32 %v933, 2147483648
          %v940 = vsel %vm938, %v932, %v939
          %vm941 = vcmp.eq.s32.totalorder %v936, 2
          %v942 = vxor.u32 %v932, 2147483648
          %v943 = vsel %vm941, %v942, %v933
          %v944 = vsel %vm937, %v940, %v943
          %v945 = vsel %vm934, nan, %v944
          %vm946 = vcmask 261120
          %v948 = vsel %vm946, %v945, 0
          %950 = vmatprep.subr.mxu0 0.0
          %951 = vmatpush1.msra.mxu0 %v830
          %952 = vmatprep.subr.mxu0 0.0
          %953 = vmatpush1.msra.mxu0 %v831
          %954 = vmatprep.subr.mxu0 0.0
          %955 = vmatpush1.msra.mxu0 %v832
          %956 = vmatprep.subr.mxu0 0.0
          %957 = vmatpush1.msra.mxu0 %v833
          %958 = vmatprep.subr.mxu0 0.0
          %959 = vmatpush1.msra.mxu0 0.0
          %960 = vmatprep.subr.mxu0 0.0
          %961 = vmatpush1.msra.mxu0 0.0
          %962 = vmatprep.subr.mxu0 0.0
          %963 = vmatpush1.msra.mxu0 0.0
          %964 = vmatprep.subr.mxu0 0.0
          %965 = vmatpush1.msra.mxu0 0.0
          %966 = vmatprep.subr.mxu0 0.0
          %967 = vmatpush1.msra.mxu0 0.0
          %968 = vmatprep.subr.mxu0 0.0
          %969 = vmatpush1.msra.mxu0 0.0
          %970 = vmatprep.subr.mxu0 0.0
          %971 = vmatpush1.msra.mxu0 0.0
          %972 = vmatprep.subr.mxu0 0.0
          %973 = vmatpush1.msra.mxu0 0.0
          %974 = vmatprep.subr.mxu0 0.0
          %975 = vmatpush1.msra.mxu0 0.0
          %976 = vmatprep.subr.mxu0 0.0
          %977 = vmatpush1.msra.mxu0 0.0
          %978 = vmatprep.subr.mxu0 0.0
          %979 = vmatpush1.msra.mxu0 0.0
          %980 = vmatprep.subr.mxu0 0.0
          %981 = vmatpush1.msra.mxu0 0.0
          %982 = vmatprep.subr.mxu0 0.0
          %983 = vmatpush1.msra.mxu0 0.0
          %984 = vmatprep.subr.mxu0 0.0
          %985 = vmatpush1.msra.mxu0 0.0
          %986 = vmatprep.subr.mxu0 0.0
          %987 = vmatpush1.msra.mxu0 0.0
          %988 = vmatprep.subr.mxu0 0.0
          %989 = vmatpush1.msra.mxu0 0.0
          %990 = vmatprep.subr.mxu0 0.0
          %991 = vmatpush1.msra.mxu0 0.0
          %992 = vmatprep.subr.mxu0 0.0
          %993 = vmatpush1.msra.mxu0 0.0
          %994 = vmatprep.subr.mxu0 0.0
          %995 = vmatpush1.msra.mxu0 0.0
          %996 = vmatprep.subr.mxu0 0.0
          %997 = vmatpush1.msra.mxu0 0.0
          %998 = vmatprep.subr.mxu0 0.0
          %999 = vmatpush1.msra.mxu0 0.0
          %1000 = vmatprep.subr.mxu0 0.0
          %1001 = vmatpush1.msra.mxu0 0.0
          %1002 = vmatprep.subr.mxu0 0.0
          %1003 = vmatpush1.msra.mxu0 0.0
          %1004 = vmatprep.subr.mxu0 0.0
          %1005 = vmatpush1.msra.mxu0 0.0
          %1006 = vmatprep.subr.mxu0 0.0
          %1007 = vmatpush1.msra.mxu0 0.0
          %1008 = vmatprep.subr.mxu0 0.0
          %1009 = vmatpush1.msra.mxu0 0.0
          %1010 = vmatprep.subr.mxu0 0.0
          %1011 = vmatpush1.msra.mxu0 0.0
          %1012 = vmatprep.subr.mxu0 0.0
          %1013 = vmatpush1.msra.mxu0 0.0
          %1014 = vmatprep.mubr.f32.mxu0 0.0
          %1015 = vmatmul.mubr.f32.gmra.mrb[0].mxu0 %v948
          %v1016 = vpop.f32.mrb[0].mxu0
          %v1017 = vadd.f32 %v828, %v1016
          %v1018 = vpop.f32.mrb[0].mxu0
          %1019 = vdwg.mxu0
          %v1020 = vmul.f32 %v1017, %v1017
          %v1021 = vmul.f32 %v1017, %v1020
          %v1022 = vmul.f32 %v1021, 0.044715
          %v1023 = vadd.f32 %v1017, %v1022
          %v1024 = vmul.f32 %v1023, 0.7978846
          %v1025 = vtanh.pop %v1024
          %v1026 = vadd.f32 %v1025, 1.0
          %v1027 = vmul.f32 %v1026, 0.5
          %v1028 = vmul.f32 %v1017, %v1027
          %v1030 = vsel %vm946, %v1028, 0
          %1032 = vmatprep.subr.mxu0 0.0
          %1033 = vmatpush1.msra.mxu0 %v834
          %1034 = vmatprep.subr.mxu0 0.0
          %1035 = vmatpush1.msra.mxu0 %v835
          %1036 = vmatprep.subr.mxu0 0.0
          %1037 = vmatpush1.msra.mxu0 %v836
          %1038 = vmatprep.subr.mxu0 0.0
          %1039 = vmatpush1.msra.mxu0 %v837
          %1040 = vmatprep.subr.mxu0 0.0
          %1041 = vmatpush1.msra.mxu0 0.0
          %1042 = vmatprep.subr.mxu0 0.0
          %1043 = vmatpush1.msra.mxu0 0.0
          %1044 = vmatprep.subr.mxu0 0.0
          %1045 = vmatpush1.msra.mxu0 0.0
          %1046 = vmatprep.subr.mxu0 0.0
          %1047 = vmatpush1.msra.mxu0 0.0
          %1048 = vmatprep.subr.mxu0 0.0
          %1049 = vmatpush1.msra.mxu0 0.0
          %1050 = vmatprep.subr.mxu0 0.0
          %1051 = vmatpush1.msra.mxu0 0.0
          %1052 = vmatprep.subr.mxu0 0.0
          %1053 = vmatpush1.msra.mxu0 0.0
          %1054 = vmatprep.subr.mxu0 0.0
          %1055 = vmatpush1.msra.mxu0 0.0
          %1056 = vmatprep.subr.mxu0 0.0
          %1057 = vmatpush1.msra.mxu0 0.0
          %1058 = vmatprep.subr.mxu0 0.0
          %1059 = vmatpush1.msra.mxu0 0.0
          %1060 = vmatprep.subr.mxu0 0.0
          %1061 = vmatpush1.msra.mxu0 0.0
          %1062 = vmatprep.subr.mxu0 0.0
          %1063 = vmatpush1.msra.mxu0 0.0
          %1064 = vmatprep.subr.mxu0 0.0
          %1065 = vmatpush1.msra.mxu0 0.0
          %1066 = vmatprep.subr.mxu0 0.0
          %1067 = vmatpush1.msra.mxu0 0.0
          %1068 = vmatprep.subr.mxu0 0.0
          %1069 = vmatpush1.msra.mxu0 0.0
          %1070 = vmatprep.subr.mxu0 0.0
          %1071 = vmatpush1.msra.mxu0 0.0
          %1072 = vmatprep.subr.mxu0 0.0
          %1073 = vmatpush1.msra.mxu0 0.0
          %1074 = vmatprep.subr.mxu0 0.0
          %1075 = vmatpush1.msra.mxu0 0.0
          %1076 = vmatprep.subr.mxu0 0.0
          %1077 = vmatpush1.msra.mxu0 0.0
          %1078 = vmatprep.subr.mxu0 0.0
          %1079 = vmatpush1.msra.mxu0 0.0
          %1080 = vmatprep.subr.mxu0 0.0
          %1081 = vmatpush1.msra.mxu0 0.0
          %1082 = vmatprep.subr.mxu0 0.0
          %1083 = vmatpush1.msra.mxu0 0.0
          %1084 = vmatprep.subr.mxu0 0.0
          %1085 = vmatpush1.msra.mxu0 0.0
          %1086 = vmatprep.subr.mxu0 0.0
          %1087 = vmatpush1.msra.mxu0 0.0
          %1088 = vmatprep.subr.mxu0 0.0
          %1089 = vmatpush1.msra.mxu0 0.0
          %1090 = vmatprep.subr.mxu0 0.0
          %1091 = vmatpush1.msra.mxu0 0.0
          %1092 = vmatprep.subr.mxu0 0.0
          %1093 = vmatpush1.msra.mxu0 0.0
          %1094 = vmatprep.subr.mxu0 0.0
          %1095 = vmatpush1.msra.mxu0 0.0
          %1096 = vmatprep.mubr.f32.mxu0 0.0
          %1097 = vmatmul.mubr.f32.gmra.mrb[0].mxu0 %v1030
          %v1098 = vpop.f32.mrb[0].mxu0
          %v1099 = vadd.f32 %v829, %v1098
          %v1100 = vpop.f32.mrb[0].mxu0
          %1101 = vdwg.mxu0
          %vm1102 = vcmask 253952
          %1103 = vst.msk [vmem:[%s354 + $0x8] sm:$0x1] %vm1102, %v1099
        $region52: #{tpu_custom_call.1} parent=39 // pred_fallthru
          _
        %s1104 = smul.u32 2, %s22
        %p1105 = scmp.lt.s32.totalorder %s21, 1
        %s1106 = scalar_select %p1105, %s21, 1
        %p1107 = scmp.lt.s32.totalorder %s1104, 1
        %s1108 = scalar_select %p1107, %s1104, 1
        %s1109 = smul.addr %s1106, 2
        %s1110 = sadd.s32 %s1108, %s1109
        %s1111 = smul.addr %s1110, 8
        %s1112 = scalar_lea.vmem %s5, %s1111
        // Predicated region
        $region53: #{tpu_custom_call.1} parent=39 // pred_check
          %p1113 = pneg %p176
        $region54: #{tpu_custom_call.1} parent=39 // pred_check_branch
          %1115 = sbr.rel (%p1113) target = $region56
        $region55: #{tpu_custom_call.1} parent=39 // pred_region
          %s1116 = smul.u32 2, %s22
        $region56: #{tpu_custom_call.1} parent=39 // pred_fallthru
          _
      $region40: #{tpu_custom_call.1} parent=5 // pred_fallthru
        _
      %p1117 = scmp.le.s32.totalorder 2, %s12
      // Predicated region
      $region57: #{tpu_custom_call.1} parent=5 // pred_check
        %p1118 = pneg %p1117
      $region58: #{tpu_custom_call.1} parent=5 // pred_check_branch
        %1120 = sbr.rel (%p1118) target = $region60
      $region59: #{tpu_custom_call.1} parent=5 // pred_region
        %s1121 = ssub.s32 %s12, 2
        // Predicated region
        $region61: #{tpu_custom_call.1} parent=59 // pred_check
          %p1122 = pneg %p182
        $region62: #{tpu_custom_call.1} parent=59 // pred_check_branch
          %1124 = sbr.rel (%p1122) target = $region64
        $region63: #{tpu_custom_call.1} parent=59 // pred_region
          %s1125 = smul.u32 2, %s24
          %p1126 = scmp.lt.s32.totalorder %s23, 1
          %s1127 = scalar_select %p1126, %s23, 1
          %p1128 = scmp.lt.s32.totalorder %s1125, 1
          %s1129 = scalar_select %p1128, %s1125, 1
          %s1130 = smul.addr %s1127, 2
          %s1131 = sadd.s32 %s1129, %s1130
          %s1132 = smul.addr %s1131, 8
          %s1133 = scalar_lea.vmem %s5, %s1132
        $region64: #{tpu_custom_call.1} parent=59 // pred_fallthru
          _
      $region60: #{tpu_custom_call.1} parent=5 // pred_fallthru
        _
    $region6: #{tpu_custom_call.1} parent=1 // loop_footer
      %s16 = sadd.s32 1, %s12
    $region7: #{tpu_custom_call.1} parent=1 // loop_footer_branch
      %11 = sbr.rel target = $region3
    $region8: #{tpu_custom_call.1} parent=1 // loop_exit
      _
    %1134 = vsyncpa [#allocation3], 1
    %s1135 = scalar_lea.sflag [#allocation3], 1
    %1136 = vsyncpa %s1135, 1

</llo_original>
